<compile_context>
chip_gen: v7x
topology: tpu7x:2x2x1
jax: 0.10.0
libtpu: 0.0.40
codegen_flags: <defaults>
</compile_context>

<pallas_src>
import jax
import jax.numpy as jnp
from jax import lax
import numpy as np
from jax.experimental import pallas as pl
from jax.experimental.pallas import tpu as pltpu


def _bilstm_dir_kernel(maxlen_ref, lens_ref, xg_ref, whh_ref, b_ref, out_ref):
    # One grid program per direction: d=0 forward, d=1 backward.
    #   maxlen_ref : (1,)        int32  SMEM (scalar prefetch) = max(src_len)
    #   lens_ref   : (Bp, 1)     int32  per-row sequence lengths
    #   xg_ref     : (T*Bp, 4H)  bf16   this direction's precomputed x @ W_ih
    #   whh_ref    : (H, 4H)     bf16   this direction's recurrent weights
    #   b_ref      : (1, 4H)     f32    this direction's bias (b_ih + b_hh)
    #   out_ref    : (Bp, H)     f32    this direction's half of the concat
    Bp, H = out_ref.shape
    G = 4 * H
    d = pl.program_id(0)
    n = maxlen_ref[0]                    # only useful timesteps are executed
    cdt = whh_ref.dtype                  # matmul compute dtype (bf16)

    # Loop-invariant hoists (JAX does not CSE broadcast_in_dim).
    lens_b = jnp.broadcast_to(lens_ref[...], (Bp, H))          # (Bp,H) int32
    bias = jnp.broadcast_to(b_ref[...], (Bp, G)).astype(jnp.float32)

    # forward walks 0..n-1, backward walks n-1..0 (padded steps are masked).
    t0 = jnp.where(d == 0, 0, n - 1)
    dt = jnp.where(d == 0, 1, -1)

    def body(step, carry):
        h, c = carry
        t = t0 + dt * step
        row = pl.multiple_of(t * Bp, Bp)
        xg = xg_ref[pl.ds(row, Bp), :].astype(jnp.float32)     # (Bp, 4H)
        # Only the recurrent matmul remains on the serial critical path.
        gates = xg + bias + jnp.dot(h.astype(cdt), whh_ref[...],
                                    preferred_element_type=jnp.float32)
        i = jax.nn.sigmoid(gates[:, 0 * H:1 * H])
        f = jax.nn.sigmoid(gates[:, 1 * H:2 * H])
        g = jnp.tanh(gates[:, 2 * H:3 * H])
        o = jax.nn.sigmoid(gates[:, 3 * H:4 * H])
        c_new = f * c + i * g
        h_new = o * jnp.tanh(c_new)
        m = t < lens_b                                          # (Bp,H) bool
        return jnp.where(m, h_new, h), jnp.where(m, c_new, c)

    zero = jnp.zeros((Bp, H), jnp.float32)
    h, _ = lax.fori_loop(0, n, body, (zero, zero))
    # representation half: forward program writes cols [0,H), backward [H,2H)
    out_ref[...] = h


def bilstm_pallas(emb_tbm, src_len, params, *, compute_dtype=jnp.bfloat16):
    """emb_tbm: (T, B, E) float32 time-major, src_len: (B,) int32."""
    T, B, E = emb_tbm.shape
    H = params["whh_f"].shape[0]
    assert H % 128 == 0, (
        "H must be a multiple of 128 so gate slices / output writes stay "
        "lane-aligned (E is unconstrained: the input projection runs in XLA).")

    # Pad batch to the bf16 sublane tile (16); pad rows get length 0 so the
    # in-kernel (t < len) mask keeps their state at exactly zero.
    Bp = max(16, -(-B // 16) * 16)
    cd = compute_dtype

    emb_p = jnp.pad(emb_tbm, ((0, 0), (0, Bp - B), (0, 0)))
    lens_p = jnp.pad(src_len.astype(jnp.int32), (0, Bp - B)).reshape(Bp, 1)
    max_len = jnp.max(src_len).astype(jnp.int32).reshape(1,)

    # Input projection: one big XLA GEMM for all timesteps and both directions
    # (f32 accumulation), stored bf16 per direction -> (2, T*Bp, 4H).
    x2d = emb_p.reshape(T * Bp, E).astype(cd)
    wih = jnp.stack([params["wih_f"], params["wih_b"]], 0).astype(cd)   # (2,E,4H)
    xg = jnp.einsum("me,dec->dmc", x2d, wih,
                    preferred_element_type=jnp.float32).astype(cd)      # (2,T*Bp,4H)
    whh = jnp.stack([params["whh_f"], params["whh_b"]], 0).astype(cd)   # (2,H,4H)
    b = jnp.stack([params["b_f"], params["b_b"]], 0).astype(jnp.float32)  # (2,1,4H)

    # Generation-aware VMEM budget: double-buffered per-direction blocks plus a
    # working-set margin, clamped below physical capacity minus headroom.
    def nb(shape, dtype):
        return int(np.prod(shape)) * jnp.dtype(dtype).itemsize

    per_dir_blocks = (nb((T * Bp, 4 * H), cd) + nb((H, 4 * H), cd)
                      + nb((1, 4 * H), jnp.float32) + nb((Bp, 1), jnp.int32)
                      + nb((Bp, H), jnp.float32))
    needed = 2 * per_dir_blocks + (4 << 20)
    try:
        cap = int(getattr(pltpu.get_tpu_info(), "vmem_capacity_bytes", 64 << 20))
    except Exception:
        cap = 64 << 20
    vmem_limit = int(min(max(needed, 32 << 20), max(cap - (16 << 20), 32 << 20)))

    grid_spec = pltpu.PrefetchScalarGridSpec(
        num_scalar_prefetch=1,
        grid=(2,),                                   # one program per direction
        in_specs=[
            pl.BlockSpec((Bp, 1), lambda d, ml: (0, 0)),                    # lens
            pl.BlockSpec((None, T * Bp, 4 * H), lambda d, ml: (d, 0, 0)),   # xg
            pl.BlockSpec((None, H, 4 * H), lambda d, ml: (d, 0, 0)),        # W_hh
            pl.BlockSpec((None, 1, 4 * H), lambda d, ml: (d, 0, 0)),        # bias
        ],
        out_specs=pl.BlockSpec((Bp, H), lambda d, ml: (0, d)),
    )

    out = pl.pallas_call(
        _bilstm_dir_kernel,
        out_shape=jax.ShapeDtypeStruct((Bp, 2 * H), jnp.float32),
        grid_spec=grid_spec,
        compiler_params=pltpu.CompilerParams(
            dimension_semantics=("parallel",),
            vmem_limit_bytes=vmem_limit),
    )(max_len, lens_p, xg, whh, b)
    return out[:B]


def bilstm_reference(emb_tbm, src_len, params, *, compute_dtype=jnp.bfloat16):
    """Pure-JAX reference using the same bf16-xg / f32-gate recipe."""
    T, B, E = emb_tbm.shape
    H = params["whh_f"].shape[0]
    cd = compute_dtype
    lens = src_len.reshape(B, 1).astype(jnp.int32)
    x = emb_tbm.astype(cd).reshape(T * B, E)

    def project(w):
        return (jnp.dot(x, w.astype(cd), preferred_element_type=jnp.float32)
                .astype(cd).reshape(T, B, 4 * H))

    xg_f, xg_b = project(params["wih_f"]), project(params["wih_b"])
    whh_f, whh_b = params["whh_f"].astype(cd), params["whh_b"].astype(cd)
    b_f = params["b_f"].astype(jnp.float32)
    b_b = params["b_b"].astype(jnp.float32)

    def cell(xg_t, h, c, whh, bias):
        gates = (xg_t.astype(jnp.float32) + bias
                 + jnp.dot(h.astype(cd), whh, preferred_element_type=jnp.float32))
        i = jax.nn.sigmoid(gates[:, 0 * H:1 * H])
        f = jax.nn.sigmoid(gates[:, 1 * H:2 * H])
        g = jnp.tanh(gates[:, 2 * H:3 * H])
        o = jax.nn.sigmoid(gates[:, 3 * H:4 * H])
        c_new = f * c + i * g
        return o * jnp.tanh(c_new), c_new

    hf = cf = hb = cb = jnp.zeros((B, H), jnp.float32)
    for step in range(T):
        t_f = step
        hn, cn = cell(xg_f[t_f], hf, cf, whh_f, b_f)
        m = t_f < lens
        hf, cf = jnp.where(m, hn, hf), jnp.where(m, cn, cf)

        t_b = T - 1 - step
        hn, cn = cell(xg_b[t_b], hb, cb, whh_b, b_b)
        m = t_b < lens
        hb, cb = jnp.where(m, hn, hb), jnp.where(m, cn, cb)
    return jnp.concatenate([hf, hb], axis=1)


class RNNBiLSTMPallas:
    """JAX/Pallas port of RNN_BiLSTM.forward."""

    def __init__(self, input_size, hidden_size, num_layers, num_classes,
                 *, embed_size=64, override_hidden=128, key=None):
        # The torch module hard-codes hidden=2048, embed=300; here we use a
        # small lane-aligned hidden size for a runnable kernel.  embed_size is
        # unconstrained (projection runs in XLA).
        del hidden_size, num_layers, num_classes
        self.hidden_size = override_hidden
        self.embed_size = embed_size
        key = jax.random.PRNGKey(42) if key is None else key
        ks = jax.random.split(key, 9)
        s = 0.05
        E, H = embed_size, self.hidden_size
        emb = jax.random.normal(ks[0], (input_size, E), jnp.float32) * s
        emb = emb.at[1].set(0.0)  # padding_idx = 1 -> zero embedding row
        self.embedding = emb
        self.params = {
            "wih_f": jax.random.normal(ks[1], (E, 4 * H), jnp.float32) * s,
            "whh_f": jax.random.normal(ks[2], (H, 4 * H), jnp.float32) * s,
            "b_f": (jax.random.normal(ks[3], (1, 4 * H), jnp.float32) * s
                    + jax.random.normal(ks[4], (1, 4 * H), jnp.float32) * s),
            "wih_b": jax.random.normal(ks[5], (E, 4 * H), jnp.float32) * s,
            "whh_b": jax.random.normal(ks[6], (H, 4 * H), jnp.float32) * s,
            "b_b": (jax.random.normal(ks[7], (1, 4 * H), jnp.float32) * s
                    + jax.random.normal(ks[8], (1, 4 * H), jnp.float32) * s),
        }

    def forward(self, x):
        src, src_len = x[0], x[1]                 # src: (B, T) int32 tokens
        emb = self.embedding[src]                 # (B, T, E) — glue gather
        emb_tbm = jnp.transpose(emb, (1, 0, 2))   # time-major (T, B, E)
        return bilstm_pallas(emb_tbm, src_len, self.params)

    def forward_reference(self, x):
        src, src_len = x[0], x[1]
        emb = self.embedding[src]
        emb_tbm = jnp.transpose(emb, (1, 0, 2))
        return bilstm_reference(emb_tbm, src_len, self.params)


if __name__ == "__main__":
    key = jax.random.PRNGKey(0)
    B, T, vocab = 2, 8, 16

    k_tok, k_param = jax.random.split(key)
    src = jax.random.randint(k_tok, (B, T), 0, vocab, dtype=jnp.int32)
    src_len = jnp.array([T, 5], dtype=jnp.int32)   # variable lengths (packed)
    # pad positions beyond the length with padding_idx=1
    pos = jnp.arange(T)[None, :]
    src = jnp.where(pos < src_len[:, None], src, 1)

    model = RNNBiLSTMPallas(input_size=vocab, hidden_size=2048,
                            num_layers=1, num_classes=4, key=k_param)

    out = jax.block_until_ready(model.forward((src, src_len)))
    ref = jax.block_until_ready(model.forward_reference((src, src_len)))
    np.testing.assert_allclose(np.asarray(out), np.asarray(ref),
                               rtol=2e-3, atol=2e-3)
    assert out.shape == (B, 2 * model.hidden_size)
    print("KERNEL_OK")
</pallas_src>

<mosaic_0001>
module attributes {stable_mosaic.version = 11 : i64} {
  func.func @_bilstm_dir_kernel(%arg0: i32, %arg1: memref<1xi32, #tpu.memory_space<smem>>, %arg2: memref<16x1xi32, #tpu.memory_space<vmem>>, %arg3: memref<1x128x512xbf16, #tpu.memory_space<vmem>>, %arg4: memref<1x128x512xbf16, #tpu.memory_space<vmem>>, %arg5: memref<1x1x512xf32, #tpu.memory_space<vmem>>, %arg6: memref<16x128xf32, #tpu.memory_space<vmem>>) attributes {dimension_semantics = [#tpu.dimension_semantics<parallel>], iteration_bounds = array<i64: 2>, scalar_prefetch = 1 : i64, scratch_operands = 0 : i64, tpu.core_type = #tpu.core_type<tc>, window_params = [{pipeline_mode = #tpu.pipeline_mode<synchronous>, transform_indices = @transform_0, window_bounds = array<i64: 16, 1>}, {transform_indices = @transform_1, window_bounds = array<i64: 1, 128, 512>}, {transform_indices = @transform_2, window_bounds = array<i64: 1, 128, 512>}, {transform_indices = @transform_3, window_bounds = array<i64: 1, 1, 512>}, {transform_indices = @transform_4, window_bounds = array<i64: 16, 128>}]} {
    %c0 = arith.constant 0 : index
    %0 = memref.load %arg1[%c0] : memref<1xi32, #tpu.memory_space<smem>>
    %c0_0 = arith.constant 0 : index
    %c0_1 = arith.constant 0 : index
    %1 = vector.load %arg2[%c0_0, %c0_1] : memref<16x1xi32, #tpu.memory_space<vmem>>, vector<16x1xi32>
    %2 = vector.shape_cast %1 : vector<16x1xi32> to vector<16x1xi32>
    %3 = vector.broadcast %2 : vector<16x1xi32> to vector<16x128xi32>
    %c0_2 = arith.constant 0 : index
    %c0_3 = arith.constant 0 : index
    %c0_4 = arith.constant 0 : index
    %4 = vector.load %arg5[%c0_2, %c0_3, %c0_4] : memref<1x1x512xf32, #tpu.memory_space<vmem>>, vector<1x1x512xf32>
    %5 = vector.shape_cast %4 : vector<1x1x512xf32> to vector<1x512xf32>
    %6 = vector.shape_cast %5 : vector<1x512xf32> to vector<1x512xf32>
    %7 = vector.broadcast %6 : vector<1x512xf32> to vector<16x512xf32>
    %c0_i32 = arith.constant 0 : i32
    %8 = arith.cmpi eq, %arg0, %c0_i32 : i32
    %c1_i32 = arith.constant 1 : i32
    %9 = arith.subi %0, %c1_i32 : i32
    %c0_i32_5 = arith.constant 0 : i32
    %10 = arith.select %8, %c0_i32_5, %9 : i32
    %c0_i32_6 = arith.constant 0 : i32
    %11 = arith.cmpi eq, %arg0, %c0_i32_6 : i32
    %c1_i32_7 = arith.constant 1 : i32
    %c-1_i32 = arith.constant -1 : i32
    %12 = arith.select %11, %c1_i32_7, %c-1_i32 : i32
    %cst = arith.constant 0.000000e+00 : f32
    %13 = vector.broadcast %cst : f32 to vector<16x128xf32>
    %c0_i32_8 = arith.constant 0 : i32
    %14 = arith.subi %0, %c0_i32_8 : i32
    %15 = arith.addi %c0_i32_8, %14 : i32
    %c1_i32_9 = arith.constant 1 : i32
    %16:2 = scf.for %arg7 = %c0_i32_8 to %15 step %c1_i32_9 iter_args(%arg8 = %13, %arg9 = %13) -> (vector<16x128xf32>, vector<16x128xf32>)  : i32 {
      %18 = arith.muli %12, %arg7 : i32
      %19 = arith.addi %10, %18 : i32
      %c16_i32 = arith.constant 16 : i32
      %20 = arith.muli %19, %c16_i32 : i32
      %21 = tpu.assume_multiple %20, 16 : i32
      %c0_12 = arith.constant 0 : index
      %22 = arith.index_cast %21 : i32 to index
      %c0_13 = arith.constant 0 : index
      %23 = vector.load %arg3[%c0_12, %22, %c0_13] : memref<1x128x512xbf16, #tpu.memory_space<vmem>>, vector<1x16x512xbf16>
      %24 = vector.shape_cast %23 : vector<1x16x512xbf16> to vector<16x512xbf16>
      %25 = arith.extf %24 : vector<16x512xbf16> to vector<16x512xf32>
      %26 = arith.addf %25, %7 : vector<16x512xf32>
      %27 = arith.truncf %arg8 : vector<16x128xf32> to vector<16x128xbf16>
      %c0_14 = arith.constant 0 : index
      %c0_15 = arith.constant 0 : index
      %c0_16 = arith.constant 0 : index
      %28 = vector.load %arg4[%c0_14, %c0_15, %c0_16] : memref<1x128x512xbf16, #tpu.memory_space<vmem>>, vector<1x128x512xbf16>
      %29 = vector.shape_cast %28 : vector<1x128x512xbf16> to vector<128x512xbf16>
      %cst_17 = arith.constant dense<0.000000e+00> : vector<16x512xf32>
      %30 = tpu.matmul %27, %29, %cst_17 {dimension_numbers = #tpu.dot_dimension_numbers<[1], [0], [0], [1], [0, 0, 1, 1], [], []>} : vector<16x128xbf16>, vector<128x512xbf16>, vector<16x512xf32> -> vector<16x512xf32>
      %31 = arith.addf %26, %30 : vector<16x512xf32>
      %32 = vector.extract_strided_slice %31 {offsets = [0, 0], sizes = [16, 128], strides = [1, 1]} : vector<16x512xf32> to vector<16x128xf32>
      %33 = arith.negf %32 : vector<16x128xf32>
      %34 = math.exp %33 : vector<16x128xf32>
      %cst_18 = arith.constant 1.000000e+00 : f32
      %35 = vector.broadcast %cst_18 : f32 to vector<16x128xf32>
      %36 = arith.addf %35, %34 : vector<16x128xf32>
      %37 = arith.divf %35, %36 : vector<16x128xf32>
      %38 = vector.extract_strided_slice %31 {offsets = [0, 128], sizes = [16, 128], strides = [1, 1]} : vector<16x512xf32> to vector<16x128xf32>
      %39 = arith.negf %38 : vector<16x128xf32>
      %40 = math.exp %39 : vector<16x128xf32>
      %cst_19 = arith.constant 1.000000e+00 : f32
      %41 = vector.broadcast %cst_19 : f32 to vector<16x128xf32>
      %42 = arith.addf %41, %40 : vector<16x128xf32>
      %43 = arith.divf %41, %42 : vector<16x128xf32>
      %44 = vector.extract_strided_slice %31 {offsets = [0, 256], sizes = [16, 128], strides = [1, 1]} : vector<16x512xf32> to vector<16x128xf32>
      %45 = math.tanh %44 : vector<16x128xf32>
      %46 = vector.extract_strided_slice %31 {offsets = [0, 384], sizes = [16, 128], strides = [1, 1]} : vector<16x512xf32> to vector<16x128xf32>
      %47 = arith.negf %46 : vector<16x128xf32>
      %48 = math.exp %47 : vector<16x128xf32>
      %cst_20 = arith.constant 1.000000e+00 : f32
      %49 = vector.broadcast %cst_20 : f32 to vector<16x128xf32>
      %50 = arith.addf %49, %48 : vector<16x128xf32>
      %51 = arith.divf %49, %50 : vector<16x128xf32>
      %52 = arith.mulf %43, %arg9 : vector<16x128xf32>
      %53 = arith.mulf %37, %45 : vector<16x128xf32>
      %54 = arith.addf %52, %53 : vector<16x128xf32>
      %55 = math.tanh %54 : vector<16x128xf32>
      %56 = arith.mulf %51, %55 : vector<16x128xf32>
      %57 = vector.broadcast %19 : i32 to vector<16x128xi32>
      %58 = arith.cmpi slt, %57, %3 : vector<16x128xi32>
      %59 = arith.select %58, %56, %arg8 : vector<16x128xi1>, vector<16x128xf32>
      %60 = arith.select %58, %54, %arg9 : vector<16x128xi1>, vector<16x128xf32>
      scf.yield %59, %60 : vector<16x128xf32>, vector<16x128xf32>
    }
    %c0_10 = arith.constant 0 : index
    %c0_11 = arith.constant 0 : index
    %17 = vector.load %arg6[%c0_10, %c0_11] : memref<16x128xf32, #tpu.memory_space<vmem>>, vector<16x128xf32>
    tpu.vector_store %arg6[%c0_10, %c0_11], %16#0 {strides = array<i32>} : memref<16x128xf32, #tpu.memory_space<vmem>>, vector<16x128xf32>,
    return
  }
  func.func @transform_0(%arg0: i32, %arg1: memref<1xi32, #tpu.memory_space<smem>>) -> (i32, i32) {
    %c0_i32 = arith.constant 0 : i32
    %c0_i32_0 = arith.constant 0 : i32
    %c0_i32_1 = arith.constant 0 : i32
    return %c0_i32, %c0_i32_0 : i32, i32
  }
  func.func @transform_1(%arg0: i32, %arg1: memref<1xi32, #tpu.memory_space<smem>>) -> (i32, i32, i32) {
    %c0_i32 = arith.constant 0 : i32
    %c0_i32_0 = arith.constant 0 : i32
    %c0_i32_1 = arith.constant 0 : i32
    return %arg0, %c0_i32, %c0_i32_0 : i32, i32, i32
  }
  func.func @transform_2(%arg0: i32, %arg1: memref<1xi32, #tpu.memory_space<smem>>) -> (i32, i32, i32) {
    %c0_i32 = arith.constant 0 : i32
    %c0_i32_0 = arith.constant 0 : i32
    %c0_i32_1 = arith.constant 0 : i32
    return %arg0, %c0_i32, %c0_i32_0 : i32, i32, i32
  }
  func.func @transform_3(%arg0: i32, %arg1: memref<1xi32, #tpu.memory_space<smem>>) -> (i32, i32, i32) {
    %c0_i32 = arith.constant 0 : i32
    %c0_i32_0 = arith.constant 0 : i32
    %c0_i32_1 = arith.constant 0 : i32
    return %arg0, %c0_i32, %c0_i32_0 : i32, i32, i32
  }
  func.func @transform_4(%arg0: i32, %arg1: memref<1xi32, #tpu.memory_space<smem>>) -> (i32, i32) {
    %c0_i32 = arith.constant 0 : i32
    %c0_i32_0 = arith.constant 0 : i32
    return %c0_i32, %arg0 : i32, i32
  }
}

</mosaic_0001>

<llo_original>
// kernel: tpu_custom_call.1
$region0: #{tpu_custom_call.1}
  #allocation0 [shape = 'u32[]', space=smem, size = 0x4, offset = 0x4, fixed_abs, tag = 'smem constant byte address 0x4 - core index']
  #allocation1 [shape = 'u32[144,128]{1,0:T(1,128)}', space=vmem, size = 0x12000, scoped, tag = 'internal scratch']
  #allocation2 [shape = 's32[1]{0}', space=sflag, size = 0x4, scoped, tag = 'scoped memory for tpu_custom_call.1']
  #allocation3 [shape = 's32[1]{0:T(128)S(6)}', space=smem, size = 0x200, scoped, tag = 'prefetched SMEM operand 0']
  %s0 = inlined_call_operand.<no memory space> [shape: s32[1], index: 0, kind: input, shape index: {}]
  %s1 = inlined_call_operand.vmem [shape: s32[16,1], index: 1, kind: input, shape index: {}]
  %s2 = inlined_call_operand.hbm [shape: bf16[2,128,512], index: 2, kind: input, shape index: {}]
  %s3 = inlined_call_operand.hbm [shape: bf16[2,128,512], index: 3, kind: input, shape index: {}]
  %s4 = inlined_call_operand.vmem [shape: f32[2,1,512], index: 4, kind: input, shape index: {}]
  %s5 = inlined_call_operand.hbm [shape: f32[16,256], index: 5, kind: output, shape index: {}]
  %s6 = sld [smem:[#allocation0]]
  $region64: #{tpu_custom_call.1} parent=0
    _
  %s8 = ssub.s32 1, %s6
  %s9 = scalar_select 0, %s8, %s6
  %10 = sst [smem:[#allocation3]] %s0
  $region1: #{tpu_custom_call.1} parent=0
    #allocation4 [shape = 'u8[262144]{0}', space=vmem, size = 0x40000, scoped, tag = 'input window, operand 2']
    #allocation5 [shape = 's32[2]{0}', space=sflag, size = 0x8, scoped, tag = 'scoped memory for tpu_custom_call.1']
    #allocation6 [shape = 's32[2]{0}', space=sflag, size = 0x8, scoped, tag = 'scoped memory for tpu_custom_call.1']
    #allocation7 [shape = 'u8[262144]{0}', space=vmem, size = 0x40000, scoped, tag = 'input window, operand 3']
    #allocation8 [shape = 's32[2]{0}', space=sflag, size = 0x8, scoped, tag = 'scoped memory for tpu_custom_call.1']
    #allocation9 [shape = 'u8[16384]{0}', space=vmem, size = 0x4000, scoped, tag = 'output window, operand 0']
    %11 = vsyncpa [#allocation5], 0
    %s12 = scalar_lea.sflag [#allocation5], 1
    %13 = vsyncpa %s12, 0
    %14 = vsyncpa [#allocation8], 0
    %s15 = scalar_lea.sflag [#allocation8], 1
    %16 = vsyncpa %s15, 0
    %17 = vsyncpa [#allocation6], 0
    %s18 = scalar_lea.sflag [#allocation6], 1
    %19 = vsyncpa %s18, 0
    loop: start=0, step=1, limit=4
    $region2: #{tpu_custom_call.1} parent=1 // loop_pre_header
      _
    $region3: #{tpu_custom_call.1} parent=1 // loop_header
      %s21 = sphi 0, %s25
      %p22 = scmp.ge.s32.totalorder %s21, 4
      %s29 = sphi 0, %s29
      %s31 = sphi 0, %s29
      %s32 = sphi 0, %s31
      %s46 = sphi 0, %s32
      %s52 = sphi 0, %s54
      %s55 = sphi 0, %s52
      %s56 = sphi 0, %s55
      %s72 = sphi 0, %s56
      %s78 = sphi 0, %s80
      %s81 = sphi 0, %s78
      %s82 = sphi 0, %s81
      %s98 = sphi 0, %s82
      %s104 = sphi 0, %s106
      %s107 = sphi 0, %s104
      %s108 = sphi 0, %s107
      %s124 = sphi 0, %s108
      %s130 = sphi 0, %s132
      %s133 = sphi 0, %s130
      %s134 = sphi 0, %s133
      %s150 = sphi 0, %s134
    $region4: #{tpu_custom_call.1} parent=1 // loop_header_branch
      %24 = sbr.rel (%p22) target = $region8
    $region5: #{tpu_custom_call.1} parent=1 // loop_body
      %s26 = ssub.s32 %s21, 1
      %s27 = ssub.s32 %s21, 2
      %s28 = sadd.s32 %s21, 1
      %s30 = sadd.s32 %s29, 1
      %p33 = scmp.eq.s32.totalorder %s21, 1
      %p34 = scmp.ne.s32.totalorder %s29, %s31
      %p35 = scmp.eq.s32.totalorder %s21, 0
      %p36 = por %p34, %p35
      %p37 = scmp.ne.s32.totalorder %s29, %s31
      %p38 = scmp.eq.s32.totalorder %s26, 1
      %p39 = por %p37, %p38
      %p40 = scmp.ne.s32.totalorder %s31, %s32
      %p41 = scmp.eq.s32.totalorder %s26, 0
      %p42 = por %p40, %p41
      %p43 = scmp.ne.s32.totalorder %s31, %s32
      %p44 = scmp.eq.s32.totalorder %s27, 1
      %p45 = por %p43, %p44
      %p47 = scmp.ne.s32.totalorder %s32, %s46
      %p48 = scmp.eq.s32.totalorder %s27, 0
      %p49 = por %p47, %p48
      %s50 = ssub.s32 %s21, %s28
      %p51 = scmp.eq.s32.totalorder %s50, 0
      %s53 = sadd.s32 %s52, 1
      %s54 = scalar_select %p51, %s52, %s53
      %p57 = pneg %p51
      %p58 = scmp.eq.s32.totalorder %s21, 1
      %p59 = por %p57, %p58
      %p60 = scmp.ne.s32.totalorder %s52, %s55
      %p61 = scmp.eq.s32.totalorder %s21, 0
      %p62 = por %p60, %p61
      %p63 = scmp.ne.s32.totalorder %s52, %s55
      %p64 = scmp.eq.s32.totalorder %s26, 1
      %p65 = por %p63, %p64
      %p66 = scmp.ne.s32.totalorder %s55, %s56
      %p67 = scmp.eq.s32.totalorder %s26, 0
      %p68 = por %p66, %p67
      %p69 = scmp.ne.s32.totalorder %s55, %s56
      %p70 = scmp.eq.s32.totalorder %s27, 1
      %p71 = por %p69, %p70
      %p73 = scmp.ne.s32.totalorder %s56, %s72
      %p74 = scmp.eq.s32.totalorder %s27, 0
      %p75 = por %p73, %p74
      %s76 = ssub.s32 %s21, %s28
      %p77 = scmp.eq.s32.totalorder %s76, 0
      %s79 = sadd.s32 %s78, 1
      %s80 = scalar_select %p77, %s78, %s79
      %p83 = pneg %p77
      %p84 = scmp.eq.s32.totalorder %s21, 1
      %p85 = por %p83, %p84
      %p86 = scmp.ne.s32.totalorder %s78, %s81
      %p87 = scmp.eq.s32.totalorder %s21, 0
      %p88 = por %p86, %p87
      %p89 = scmp.ne.s32.totalorder %s78, %s81
      %p90 = scmp.eq.s32.totalorder %s26, 1
      %p91 = por %p89, %p90
      %p92 = scmp.ne.s32.totalorder %s81, %s82
      %p93 = scmp.eq.s32.totalorder %s26, 0
      %p94 = por %p92, %p93
      %p95 = scmp.ne.s32.totalorder %s81, %s82
      %p96 = scmp.eq.s32.totalorder %s27, 1
      %p97 = por %p95, %p96
      %p99 = scmp.ne.s32.totalorder %s82, %s98
      %p100 = scmp.eq.s32.totalorder %s27, 0
      %p101 = por %p99, %p100
      %s102 = ssub.s32 %s21, %s28
      %p103 = scmp.eq.s32.totalorder %s102, 0
      %s105 = sadd.s32 %s104, 1
      %s106 = scalar_select %p103, %s104, %s105
      %p109 = pneg %p103
      %p110 = scmp.eq.s32.totalorder %s21, 1
      %p111 = por %p109, %p110
      %p112 = scmp.ne.s32.totalorder %s104, %s107
      %p113 = scmp.eq.s32.totalorder %s21, 0
      %p114 = por %p112, %p113
      %p115 = scmp.ne.s32.totalorder %s104, %s107
      %p116 = scmp.eq.s32.totalorder %s26, 1
      %p117 = por %p115, %p116
      %p118 = scmp.ne.s32.totalorder %s107, %s108
      %p119 = scmp.eq.s32.totalorder %s26, 0
      %p120 = por %p118, %p119
      %p121 = scmp.ne.s32.totalorder %s107, %s108
      %p122 = scmp.eq.s32.totalorder %s27, 1
      %p123 = por %p121, %p122
      %p125 = scmp.ne.s32.totalorder %s108, %s124
      %p126 = scmp.eq.s32.totalorder %s27, 0
      %p127 = por %p125, %p126
      %s128 = ssub.s32 %s21, %s28
      %p129 = scmp.eq.s32.totalorder %s128, 0
      %s131 = sadd.s32 %s130, 1
      %s132 = scalar_select %p129, %s130, %s131
      %p135 = pneg %p129
      %p136 = scmp.eq.s32.totalorder %s21, 1
      %p137 = por %p135, %p136
      %p138 = scmp.ne.s32.totalorder %s130, %s133
      %p139 = scmp.eq.s32.totalorder %s21, 0
      %p140 = por %p138, %p139
      %p141 = scmp.ne.s32.totalorder %s130, %s133
      %p142 = scmp.eq.s32.totalorder %s26, 1
      %p143 = por %p141, %p142
      %p144 = scmp.ne.s32.totalorder %s133, %s134
      %p145 = scmp.eq.s32.totalorder %s26, 0
      %p146 = por %p144, %p145
      %p147 = scmp.ne.s32.totalorder %s133, %s134
      %p148 = scmp.eq.s32.totalorder %s27, 1
      %p149 = por %p147, %p148
      %p151 = scmp.ne.s32.totalorder %s134, %s150
      %p152 = scmp.eq.s32.totalorder %s27, 0
      %p153 = por %p151, %p152
      %p154 = scmp.le.s32.totalorder 1, %s21
      %p155 = scmp.lt.s32.totalorder %s21, 3
      %p156 = pnand %p154, %p155
      %p157 = pneg %p156
      // Predicated region
      $region9: #{tpu_custom_call.1} parent=5 // pred_check
        _
      $region10: #{tpu_custom_call.1} parent=5 // pred_check_branch
        %159 = sbr.rel (%p156) target = $region12
      $region11: #{tpu_custom_call.1} parent=5 // pred_region
        %s160 = ssub.s32 %s21, 1
        // Predicated region
        $region13: #{tpu_custom_call.1} parent=11 // pred_check
          %p161 = pneg %p42
        $region14: #{tpu_custom_call.1} parent=11 // pred_check_branch
          %163 = sbr.rel (%p161) target = $region16
        $region15: #{tpu_custom_call.1} parent=11 // pred_region
          _
        $region16: #{tpu_custom_call.1} parent=11 // pred_fallthru
          _
      $region12: #{tpu_custom_call.1} parent=5 // pred_fallthru
        _
      %p164 = scmp.lt.s32.totalorder %s21, 2
      // Predicated region
      $region17: #{tpu_custom_call.1} parent=5 // pred_check
        %p165 = pneg %p164
      $region18: #{tpu_custom_call.1} parent=5 // pred_check_branch
        %167 = sbr.rel (%p165) target = $region20
      $region19: #{tpu_custom_call.1} parent=5 // pred_region
        // Predicated region
        $region21: #{tpu_custom_call.1} parent=19 // pred_check
          %p168 = pneg %p62
        $region22: #{tpu_custom_call.1} parent=19 // pred_check_branch
          %170 = sbr.rel (%p168) target = $region24
        $region23: #{tpu_custom_call.1} parent=19 // pred_region
          %s171 = sand.u32 %s52, 1
          %s172 = scalar_lea.sflag [#allocation5], %s171
          %s173 = sand.u32 %s52, 1
          %s174 = smul.addr %s173, 256
          %s175 = scalar_lea.vmem [#allocation4], %s174
          %s177 = ssub.s32 4096, 4096
          %178 = vsyncadd %s172, %s177
          %s179 = smul.addr %s21, 64
          %s180 = smul.addr %s179, 64
          %s181 = scalar_lea.hbm %s2, %s180
          %s182 = sshll.u32 %s175, 4
          %s183 = int_to_ptr.vmem [resolvable:$true] %s182
          %188 = dma.hbm_to_vmem [thread:$0]  %s181, 4096, %s183, %s172, 256, 256, 16
        $region24: #{tpu_custom_call.1} parent=19 // pred_fallthru
          _
        // Predicated region
        $region25: #{tpu_custom_call.1} parent=19 // pred_check
          %p189 = pneg %p88
        $region26: #{tpu_custom_call.1} parent=19 // pred_check_branch
          %191 = sbr.rel (%p189) target = $region28
        $region27: #{tpu_custom_call.1} parent=19 // pred_region
          %s192 = sand.u32 %s78, 1
          %s193 = scalar_lea.sflag [#allocation8], %s192
          %s194 = sand.u32 %s78, 1
          %s195 = smul.addr %s194, 256
          %s196 = scalar_lea.vmem [#allocation7], %s195
          %s198 = ssub.s32 4096, 4096
          %199 = vsyncadd %s193, %s198
          %s200 = smul.addr %s21, 64
          %s201 = smul.addr %s200, 64
          %s202 = scalar_lea.hbm %s3, %s201
          %s203 = sshll.u32 %s196, 4
          %s204 = int_to_ptr.vmem [resolvable:$true] %s203
          %209 = dma.hbm_to_vmem [thread:$0]  %s202, 4096, %s204, %s193, 256, 256, 16
        $region28: #{tpu_custom_call.1} parent=19 // pred_fallthru
          _
        // Predicated region
        $region29: #{tpu_custom_call.1} parent=19 // pred_check
          %p210 = pneg %p114
        $region30: #{tpu_custom_call.1} parent=19 // pred_check_branch
          %212 = sbr.rel (%p210) target = $region32
        $region31: #{tpu_custom_call.1} parent=19 // pred_region
          %p213 = scmp.lt.s32.totalorder %s21, 1
          %s214 = scalar_select %p213, %s21, 1
          %s215 = smul.addr %s214, 4
          %s216 = scalar_lea.vmem %s4, %s215
        $region32: #{tpu_custom_call.1} parent=19 // pred_fallthru
          _
      $region20: #{tpu_custom_call.1} parent=5 // pred_fallthru
        _
      %p217 = scmp.le.s32.totalorder 1, %s21
      %p218 = scmp.lt.s32.totalorder %s21, 3
      %p219 = pnand %p217, %p218
      %p220 = pneg %p219
      // Predicated region
      $region33: #{tpu_custom_call.1} parent=5 // pred_check
        _
      $region34: #{tpu_custom_call.1} parent=5 // pred_check_branch
        %222 = sbr.rel (%p219) target = $region36
      $region35: #{tpu_custom_call.1} parent=5 // pred_region
        %s223 = ssub.s32 %s21, 1
        %s224 = sand.u32 %s55, 1
        %s225 = scalar_lea.sflag [#allocation5], %s224
        %s226 = sand.u32 %s55, 1
        %s227 = smul.addr %s226, 256
        %s228 = scalar_lea.vmem [#allocation4], %s227
        // Predicated region
        $region37: #{tpu_custom_call.1} parent=35 // pred_check
          %p229 = pneg %p68
        $region38: #{tpu_custom_call.1} parent=35 // pred_check_branch
          %231 = sbr.rel (%p229) target = $region40
        $region39: #{tpu_custom_call.1} parent=35 // pred_region
          %232 = dma.done %s225, 4096
        $region40: #{tpu_custom_call.1} parent=35 // pred_fallthru
          _
        %s233 = sand.u32 %s81, 1
        %s234 = scalar_lea.sflag [#allocation8], %s233
        %s235 = sand.u32 %s81, 1
        %s236 = smul.addr %s235, 256
        %s237 = scalar_lea.vmem [#allocation7], %s236
        // Predicated region
        $region41: #{tpu_custom_call.1} parent=35 // pred_check
          %p238 = pneg %p94
        $region42: #{tpu_custom_call.1} parent=35 // pred_check_branch
          %240 = sbr.rel (%p238) target = $region44
        $region43: #{tpu_custom_call.1} parent=35 // pred_region
          %241 = dma.done %s234, 4096
        $region44: #{tpu_custom_call.1} parent=35 // pred_fallthru
          _
        %p242 = pneg %p42
        %p243 = pneg %p39
        %s244 = sand.u32 %s55, 1
        %s245 = scalar_lea.sflag [#allocation5], %s244
        %s246 = sand.u32 %s55, 1
        %s247 = smul.addr %s246, 256
        %s248 = scalar_lea.vmem [#allocation4], %s247
        %p249 = pneg %p68
        %p250 = pneg %p65
        %s251 = sand.u32 %s81, 1
        %s252 = scalar_lea.sflag [#allocation8], %s251
        %s253 = sand.u32 %s81, 1
        %s254 = smul.addr %s253, 256
        %s255 = scalar_lea.vmem [#allocation7], %s254
        %p256 = pneg %p94
        %p257 = pneg %p91
        %p258 = scmp.lt.s32.totalorder %s26, 1
        %s259 = scalar_select %p258, %s26, 1
        %s260 = smul.addr %s259, 4
        %s261 = scalar_lea.vmem %s4, %s260
        %p262 = pneg %p120
        %p263 = pneg %p117
        %p264 = pneg %p146
        %p265 = pneg %p143
        %s266 = sand.u32 %s133, 1
        %s267 = scalar_lea.sflag [#allocation6], %s266
        %s268 = sand.u32 %s133, 1
        %s269 = smul.addr %s268, 16
        %s270 = scalar_lea.vmem [#allocation9], %s269
        %p271 = scmp.lt.s32.totalorder %s26, 1
        %s272 = scalar_select %p271, %s26, 1
        %s273 = smul.addr %s272, 4
        %s274 = scalar_lea.vmem %s4, %s273
        %s276 = sld [smem:[#allocation3]]
        %v277 = vld [vmem:[%s1] sm:$0xff]
        %v278 = vld [vmem:[%s1 + $0x8] sm:$0xff]
        %279 = vset.pattern.permute.xlu0 0
        %280 = vperm.xlu0 %279, %v277
        %v281 = vpop.permute.xlu0 %280
        %282 = vset.pattern.permute.xlu0 0
        %283 = vperm.xlu0 %282, %v278
        %v284 = vpop.permute.xlu0 %283
        %v285 = vld [vmem:[%s274] sm:$0xf]
        %v287 = vlaneseq
        %v288 = vshrl.u32 %v287, 7
        %v289 = vsub.s32 0, %v288
        %v290 = vrot.slane %v285, %v289
        %v291 = vlaneseq
        %v292 = vshrl.u32 %v291, 7
        %v293 = vsub.s32 1, %v292
        %v294 = vrot.slane %v285, %v293
        %v295 = vlaneseq
        %v296 = vshrl.u32 %v295, 7
        %v297 = vsub.s32 2, %v296
        %v298 = vrot.slane %v285, %v297
        %v299 = vlaneseq
        %v300 = vshrl.u32 %v299, 7
        %v301 = vsub.s32 3, %v300
        %v302 = vrot.slane %v285, %v301
        %p307 = scmp.eq.s32.totalorder %s26, 0
        %s308 = ssub.s32 %s276, 1
        %s309 = scalar_select %p307, 0, %s308
        %s310 = scalar_select %p307, 1, 4294967295
        // While loop
        $region45: #{tpu_custom_call.1} parent=35 // loop_pre_header
          _
        $region46: #{tpu_custom_call.1} parent=35 // loop_header
          %s312 = sphi 0, %s314
          %p313 = scmp.ge.s32.totalorder %s312, %s276
          %v317 = vphi 0.0, %v687
          %v318 = vphi 0.0, %v688
          %v319 = vphi 0.0, %v689
          %v320 = vphi 0.0, %v690
        $region47: #{tpu_custom_call.1} parent=35 // loop_header_branch
          %316 = sbr.rel (%p313) target = $region51
        $region48: #{tpu_custom_call.1} parent=35 // loop_body
          %s321 = smul.u32 %s310, %s312
          %s322 = sadd.s32 %s309, %s321
          %s323 = smul.u32 %s322, 16
          %s324 = sshra.s32 %s323, 3
          %s325 = sand.u32 %s323, 7
          %s326 = smul.u32 %s324, 4
          %s327 = smul.addr %s326, 4
          %s328 = scalar_lea.vmem %s228, %s327 [#allocation4]
          %v329 = vld [vmem:[%s328] sm:$0xff]
          %v330 = vld [vmem:[%s328 + $0x8] sm:$0xff]
          %v331 = vld [vmem:[%s328 + $0x10] sm:$0xff]
          %v332 = vld [vmem:[%s328 + $0x18] sm:$0xff]
          %v333 = vunpack.c.l.bf16 %v329
          %v334 = vunpack.c.h.bf16 %v329
          %v335 = vunpack.c.l.bf16 %v330
          %v336 = vunpack.c.h.bf16 %v330
          %v337 = vunpack.c.l.bf16 %v331
          %v338 = vunpack.c.h.bf16 %v331
          %v339 = vunpack.c.l.bf16 %v332
          %v340 = vunpack.c.h.bf16 %v332
          %v341 = vadd.f32 %v333, %v290
          %v342 = vadd.f32 %v334, %v294
          %v343 = vadd.f32 %v335, %v298
          %v344 = vadd.f32 %v336, %v302
          %v345 = vadd.f32 %v337, %v290
          %v346 = vadd.f32 %v338, %v294
          %v347 = vadd.f32 %v339, %v298
          %v348 = vadd.f32 %v340, %v302
          %v349 = vpack.c.bf16 %v318, %v317
          %v350 = vld [vmem:[%s237] sm:$0xff]
          %v351 = vld [vmem:[%s237 + $0x8] sm:$0xff]
          %v352 = vld [vmem:[%s237 + $0x10] sm:$0xff]
          %v353 = vld [vmem:[%s237 + $0x18] sm:$0xff]
          %v354 = vld [vmem:[%s237 + $0x20] sm:$0xff]
          %v355 = vld [vmem:[%s237 + $0x28] sm:$0xff]
          %v356 = vld [vmem:[%s237 + $0x30] sm:$0xff]
          %v357 = vld [vmem:[%s237 + $0x38] sm:$0xff]
          %v358 = vld [vmem:[%s237 + $0x40] sm:$0xff]
          %v359 = vld [vmem:[%s237 + $0x48] sm:$0xff]
          %v360 = vld [vmem:[%s237 + $0x50] sm:$0xff]
          %v361 = vld [vmem:[%s237 + $0x58] sm:$0xff]
          %v362 = vld [vmem:[%s237 + $0x60] sm:$0xff]
          %v363 = vld [vmem:[%s237 + $0x68] sm:$0xff]
          %v364 = vld [vmem:[%s237 + $0x70] sm:$0xff]
          %v365 = vld [vmem:[%s237 + $0x78] sm:$0xff]
          %v366 = vld [vmem:[%s237 + $0x80] sm:$0xff]
          %v367 = vld [vmem:[%s237 + $0x88] sm:$0xff]
          %v368 = vld [vmem:[%s237 + $0x90] sm:$0xff]
          %v369 = vld [vmem:[%s237 + $0x98] sm:$0xff]
          %v370 = vld [vmem:[%s237 + $0xa0] sm:$0xff]
          %v371 = vld [vmem:[%s237 + $0xa8] sm:$0xff]
          %v372 = vld [vmem:[%s237 + $0xb0] sm:$0xff]
          %v373 = vld [vmem:[%s237 + $0xb8] sm:$0xff]
          %v374 = vld [vmem:[%s237 + $0xc0] sm:$0xff]
          %v375 = vld [vmem:[%s237 + $0xc8] sm:$0xff]
          %v376 = vld [vmem:[%s237 + $0xd0] sm:$0xff]
          %v377 = vld [vmem:[%s237 + $0xd8] sm:$0xff]
          %v378 = vld [vmem:[%s237 + $0xe0] sm:$0xff]
          %v379 = vld [vmem:[%s237 + $0xe8] sm:$0xff]
          %v380 = vld [vmem:[%s237 + $0xf0] sm:$0xff]
          %v381 = vld [vmem:[%s237 + $0xf8] sm:$0xff]
          %v414 = vunpack.c.l.b16 %v350
          %v415 = vunpack.c.h.b16 %v350
          %v416 = vunpack.c.l.b16 %v351
          %v417 = vunpack.c.h.b16 %v351
          %v418 = vunpack.c.l.b16 %v352
          %v419 = vunpack.c.h.b16 %v352
          %v420 = vunpack.c.l.b16 %v353
          %v421 = vunpack.c.h.b16 %v353
          %v422 = vunpack.c.l.b16 %v354
          %v423 = vunpack.c.h.b16 %v354
          %v424 = vunpack.c.l.b16 %v355
          %v425 = vunpack.c.h.b16 %v355
          %v426 = vunpack.c.l.b16 %v356
          %v427 = vunpack.c.h.b16 %v356
          %v428 = vunpack.c.l.b16 %v357
          %v429 = vunpack.c.h.b16 %v357
          %v430 = vunpack.c.l.b16 %v358
          %v431 = vunpack.c.h.b16 %v358
          %v432 = vunpack.c.l.b16 %v359
          %v433 = vunpack.c.h.b16 %v359
          %v434 = vunpack.c.l.b16 %v360
          %v435 = vunpack.c.h.b16 %v360
          %v436 = vunpack.c.l.b16 %v361
          %v437 = vunpack.c.h.b16 %v361
          %v438 = vunpack.c.l.b16 %v362
          %v439 = vunpack.c.h.b16 %v362
          %v440 = vunpack.c.l.b16 %v363
          %v441 = vunpack.c.h.b16 %v363
          %v442 = vunpack.c.l.b16 %v364
          %v443 = vunpack.c.h.b16 %v364
          %v444 = vunpack.c.l.b16 %v365
          %v445 = vunpack.c.h.b16 %v365
          %v446 = vunpack.c.l.b16 %v366
          %v447 = vunpack.c.h.b16 %v366
          %v448 = vunpack.c.l.b16 %v367
          %v449 = vunpack.c.h.b16 %v367
          %v450 = vunpack.c.l.b16 %v368
          %v451 = vunpack.c.h.b16 %v368
          %v452 = vunpack.c.l.b16 %v369
          %v453 = vunpack.c.h.b16 %v369
          %v454 = vunpack.c.l.b16 %v370
          %v455 = vunpack.c.h.b16 %v370
          %v456 = vunpack.c.l.b16 %v371
          %v457 = vunpack.c.h.b16 %v371
          %v458 = vunpack.c.l.b16 %v372
          %v459 = vunpack.c.h.b16 %v372
          %v460 = vunpack.c.l.b16 %v373
          %v461 = vunpack.c.h.b16 %v373
          %v462 = vunpack.c.l.b16 %v374
          %v463 = vunpack.c.h.b16 %v374
          %v464 = vunpack.c.l.b16 %v375
          %v465 = vunpack.c.h.b16 %v375
          %v466 = vunpack.c.l.b16 %v376
          %v467 = vunpack.c.h.b16 %v376
          %v468 = vunpack.c.l.b16 %v377
          %v469 = vunpack.c.h.b16 %v377
          %v470 = vunpack.c.l.b16 %v378
          %v471 = vunpack.c.h.b16 %v378
          %v472 = vunpack.c.l.b16 %v379
          %v473 = vunpack.c.h.b16 %v379
          %v474 = vunpack.c.l.b16 %v380
          %v475 = vunpack.c.h.b16 %v380
          %v476 = vunpack.c.l.b16 %v381
          %v477 = vunpack.c.h.b16 %v381
          %v478 = vpack.c.b16 %v418, %v414
          %v479 = vpack.c.b16 %v419, %v415
          %v480 = vpack.c.b16 %v420, %v416
          %v481 = vpack.c.b16 %v421, %v417
          %v482 = vpack.c.b16 %v426, %v422
          %v483 = vpack.c.b16 %v427, %v423
          %v484 = vpack.c.b16 %v428, %v424
          %v485 = vpack.c.b16 %v429, %v425
          %v486 = vpack.c.b16 %v434, %v430
          %v487 = vpack.c.b16 %v435, %v431
          %v488 = vpack.c.b16 %v436, %v432
          %v489 = vpack.c.b16 %v437, %v433
          %v490 = vpack.c.b16 %v442, %v438
          %v491 = vpack.c.b16 %v443, %v439
          %v492 = vpack.c.b16 %v444, %v440
          %v493 = vpack.c.b16 %v445, %v441
          %v494 = vpack.c.b16 %v450, %v446
          %v495 = vpack.c.b16 %v451, %v447
          %v496 = vpack.c.b16 %v452, %v448
          %v497 = vpack.c.b16 %v453, %v449
          %v498 = vpack.c.b16 %v458, %v454
          %v499 = vpack.c.b16 %v459, %v455
          %v500 = vpack.c.b16 %v460, %v456
          %v501 = vpack.c.b16 %v461, %v457
          %v502 = vpack.c.b16 %v466, %v462
          %v503 = vpack.c.b16 %v467, %v463
          %v504 = vpack.c.b16 %v468, %v464
          %v505 = vpack.c.b16 %v469, %v465
          %v506 = vpack.c.b16 %v474, %v470
          %v507 = vpack.c.b16 %v475, %v471
          %v508 = vpack.c.b16 %v476, %v472
          %v509 = vpack.c.b16 %v477, %v473
          %542 = vmatprep.subr.bf16.mxu0 %v479
          %543 = vmatpush1.bf16.msra.mxu0 %v478
          %544 = vmatprep.subr.bf16.mxu0 %v483
          %545 = vmatpush1.bf16.msra.mxu0 %v482
          %546 = vmatprep.subr.bf16.mxu0 %v487
          %547 = vmatpush1.bf16.msra.mxu0 %v486
          %548 = vmatprep.subr.bf16.mxu0 %v491
          %549 = vmatpush1.bf16.msra.mxu0 %v490
          %550 = vmatprep.subr.bf16.mxu0 %v495
          %551 = vmatpush1.bf16.msra.mxu0 %v494
          %552 = vmatprep.subr.bf16.mxu0 %v499
          %553 = vmatpush1.bf16.msra.mxu0 %v498
          %554 = vmatprep.subr.bf16.mxu0 %v503
          %555 = vmatpush1.bf16.msra.mxu0 %v502
          %556 = vmatprep.subr.bf16.mxu0 %v507
          %557 = vmatpush1.bf16.msra.mxu0 %v506
          %558 = vmatprep.subr.bf16.mxu0 0
          %559 = vmatpush1.bf16.msra.mxu0 0
          %560 = vmatprep.subr.bf16.mxu0 0
          %561 = vmatpush1.bf16.msra.mxu0 0
          %562 = vmatprep.subr.bf16.mxu0 0
          %563 = vmatpush1.bf16.msra.mxu0 0
          %564 = vmatprep.subr.bf16.mxu0 0
          %565 = vmatpush1.bf16.msra.mxu0 0
          %566 = vmatprep.subr.bf16.mxu0 0
          %567 = vmatpush1.bf16.msra.mxu0 0
          %568 = vmatprep.subr.bf16.mxu0 0
          %569 = vmatpush1.bf16.msra.mxu0 0
          %570 = vmatprep.subr.bf16.mxu0 0
          %571 = vmatpush1.bf16.msra.mxu0 0
          %572 = vmatprep.subr.bf16.mxu0 0
          %573 = vmatpush1.bf16.msra.mxu0 0
          %574 = vmatprep.mubr.bf16.mxu0 0
          %575 = vmatmul.mubr.bf16.gmra.mrb[0].mxu0 %v349
          %v576 = vpop.f32.mrb[0].mxu0
          %v577 = vadd.f32 0.0, %v576
          %v578 = vpop.f32.mrb[0].mxu0
          %v579 = vadd.f32 0.0, %v578
          %v580 = vpop.f32.mrb[0].mxu0
          %v581 = vadd.f32 0.0, %v580
          %v582 = vpop.f32.mrb[0].mxu0
          %v583 = vadd.f32 0.0, %v582
          %584 = vdwg.mxu0
          %585 = vmatprep.subr.bf16.mxu0 %v481
          %586 = vmatpush1.bf16.msra.mxu0 %v480
          %587 = vmatprep.subr.bf16.mxu0 %v485
          %588 = vmatpush1.bf16.msra.mxu0 %v484
          %589 = vmatprep.subr.bf16.mxu0 %v489
          %590 = vmatpush1.bf16.msra.mxu0 %v488
          %591 = vmatprep.subr.bf16.mxu0 %v493
          %592 = vmatpush1.bf16.msra.mxu0 %v492
          %593 = vmatprep.subr.bf16.mxu0 %v497
          %594 = vmatpush1.bf16.msra.mxu0 %v496
          %595 = vmatprep.subr.bf16.mxu0 %v501
          %596 = vmatpush1.bf16.msra.mxu0 %v500
          %597 = vmatprep.subr.bf16.mxu0 %v505
          %598 = vmatpush1.bf16.msra.mxu0 %v504
          %599 = vmatprep.subr.bf16.mxu0 %v509
          %600 = vmatpush1.bf16.msra.mxu0 %v508
          %601 = vmatprep.subr.bf16.mxu0 0
          %602 = vmatpush1.bf16.msra.mxu0 0
          %603 = vmatprep.subr.bf16.mxu0 0
          %604 = vmatpush1.bf16.msra.mxu0 0
          %605 = vmatprep.subr.bf16.mxu0 0
          %606 = vmatpush1.bf16.msra.mxu0 0
          %607 = vmatprep.subr.bf16.mxu0 0
          %608 = vmatpush1.bf16.msra.mxu0 0
          %609 = vmatprep.subr.bf16.mxu0 0
          %610 = vmatpush1.bf16.msra.mxu0 0
          %611 = vmatprep.subr.bf16.mxu0 0
          %612 = vmatpush1.bf16.msra.mxu0 0
          %613 = vmatprep.subr.bf16.mxu0 0
          %614 = vmatpush1.bf16.msra.mxu0 0
          %615 = vmatprep.subr.bf16.mxu0 0
          %616 = vmatpush1.bf16.msra.mxu0 0
          %617 = vmatprep.mubr.bf16.mxu0 0
          %618 = vmatmul.mubr.bf16.gmra.mrb[0].mxu0 %v349
          %v619 = vpop.f32.mrb[0].mxu0
          %v620 = vadd.f32 0.0, %v619
          %v621 = vpop.f32.mrb[0].mxu0
          %v622 = vadd.f32 0.0, %v621
          %v623 = vpop.f32.mrb[0].mxu0
          %v624 = vadd.f32 0.0, %v623
          %v625 = vpop.f32.mrb[0].mxu0
          %v626 = vadd.f32 0.0, %v625
          %627 = vdwg.mxu0
          %v628 = vadd.f32 %v341, %v577
          %v629 = vadd.f32 %v342, %v579
          %v630 = vadd.f32 %v343, %v620
          %v631 = vadd.f32 %v344, %v622
          %v632 = vadd.f32 %v345, %v581
          %v633 = vadd.f32 %v346, %v583
          %v634 = vadd.f32 %v347, %v624
          %v635 = vadd.f32 %v348, %v626
          %v636 = vxor.u32 %v628, 2147483648
          %v637 = vxor.u32 %v632, 2147483648
          %v638 = vmul.f32 %v636, 1.442695
          %v639 = vpow.pop %v638
          %v640 = vmul.f32 %v637, 1.442695
          %v641 = vpow.pop %v640
          %v642 = vadd.f32 %v639, 1.0
          %v643 = vadd.f32 %v641, 1.0
          %v644 = vrcp.pop %v642
          %v645 = vmul.f32 1.0, %v644
          %v646 = vrcp.pop %v643
          %v647 = vmul.f32 1.0, %v646
          %v648 = vxor.u32 %v629, 2147483648
          %v649 = vxor.u32 %v633, 2147483648
          %v650 = vmul.f32 %v648, 1.442695
          %v651 = vpow.pop %v650
          %v652 = vmul.f32 %v649, 1.442695
          %v653 = vpow.pop %v652
          %v654 = vadd.f32 %v651, 1.0
          %v655 = vadd.f32 %v653, 1.0
          %v656 = vrcp.pop %v654
          %v657 = vmul.f32 1.0, %v656
          %v658 = vrcp.pop %v655
          %v659 = vmul.f32 1.0, %v658
          %v660 = vtanh.pop %v630
          %v661 = vtanh.pop %v634
          %v662 = vxor.u32 %v631, 2147483648
          %v663 = vxor.u32 %v635, 2147483648
          %v664 = vmul.f32 %v662, 1.442695
          %v665 = vpow.pop %v664
          %v666 = vmul.f32 %v663, 1.442695
          %v667 = vpow.pop %v666
          %v668 = vadd.f32 %v665, 1.0
          %v669 = vadd.f32 %v667, 1.0
          %v670 = vrcp.pop %v668
          %v671 = vmul.f32 1.0, %v670
          %v672 = vrcp.pop %v669
          %v673 = vmul.f32 1.0, %v672
          %v674 = vmul.f32 %v657, %v319
          %v675 = vmul.f32 %v659, %v320
          %v676 = vmul.f32 %v645, %v660
          %v677 = vmul.f32 %v647, %v661
          %v678 = vadd.f32 %v674, %v676
          %v679 = vadd.f32 %v675, %v677
          %v680 = vtanh.pop %v678
          %v681 = vtanh.pop %v679
          %v682 = vmul.f32 %v671, %v680
          %v683 = vmul.f32 %v673, %v681
          %v684 = vstv %s322
          %vm685 = vcmp.lt.s32.totalorder %v684, %v281
          %vm686 = vcmp.lt.s32.totalorder %v684, %v284
          %v687 = vsel %vm685, %v682, %v317
          %v688 = vsel %vm686, %v683, %v318
          %v689 = vsel %vm685, %v678, %v319
          %v690 = vsel %vm686, %v679, %v320
        $region49: #{tpu_custom_call.1} parent=35 // loop_footer
          %s314 = sadd.s32 %s312, 1
        $region50: #{tpu_custom_call.1} parent=35 // loop_footer_branch
          %311 = sbr.rel target = $region46
        $region51: #{tpu_custom_call.1} parent=35 // loop_exit
          _
        %691 = vst [vmem:[%s270] sm:$0xff] %v317
        %692 = vst [vmem:[%s270 + $0x8] sm:$0xff] %v318
        %s693 = sand.u32 %s133, 1
        %s694 = scalar_lea.sflag [#allocation6], %s693
        %s695 = sand.u32 %s133, 1
        %s696 = smul.addr %s695, 16
        %s697 = scalar_lea.vmem [#allocation9], %s696
        // Predicated region
        $region52: #{tpu_custom_call.1} parent=35 // pred_check
          %p698 = pneg %p143
        $region53: #{tpu_custom_call.1} parent=35 // pred_check_branch
          %700 = sbr.rel (%p698) target = $region55
        $region54: #{tpu_custom_call.1} parent=35 // pred_region
          %s702 = ssub.s32 256, 256
          %703 = vsyncadd %s694, %s702
          %s704 = smul.addr %s26, 128
          %s705 = scalar_lea.hbm %s5, %s704
          %s706 = sshll.u32 %s697, 4
          %s707 = int_to_ptr.vmem [resolvable:$true] %s706
          %712 = dma.vmem_to_hbm [thread:$0]  %s707, 256, %s705, %s694, 128, 256, 8
        $region55: #{tpu_custom_call.1} parent=35 // pred_fallthru
          _
      $region36: #{tpu_custom_call.1} parent=5 // pred_fallthru
        _
      %p713 = scmp.le.s32.totalorder 2, %s21
      // Predicated region
      $region56: #{tpu_custom_call.1} parent=5 // pred_check
        %p714 = pneg %p713
      $region57: #{tpu_custom_call.1} parent=5 // pred_check_branch
        %716 = sbr.rel (%p714) target = $region59
      $region58: #{tpu_custom_call.1} parent=5 // pred_region
        %s717 = ssub.s32 %s21, 2
        // Predicated region
        $region60: #{tpu_custom_call.1} parent=58 // pred_check
          %p718 = pneg %p149
        $region61: #{tpu_custom_call.1} parent=58 // pred_check_branch
          %720 = sbr.rel (%p718) target = $region63
        $region62: #{tpu_custom_call.1} parent=58 // pred_region
          %s721 = sand.u32 %s134, 1
          %s722 = scalar_lea.sflag [#allocation6], %s721
          %s723 = sand.u32 %s134, 1
          %s724 = smul.addr %s723, 16
          %s725 = scalar_lea.vmem [#allocation9], %s724
          %726 = dma.done %s722, 256
        $region63: #{tpu_custom_call.1} parent=58 // pred_fallthru
          _
      $region59: #{tpu_custom_call.1} parent=5 // pred_fallthru
        _
    $region6: #{tpu_custom_call.1} parent=1 // loop_footer
      %s25 = sadd.s32 1, %s21
    $region7: #{tpu_custom_call.1} parent=1 // loop_footer_branch
      %20 = sbr.rel target = $region3
    $region8: #{tpu_custom_call.1} parent=1 // loop_exit
      _
    %727 = vsyncpa [#allocation5], 1
    %s728 = scalar_lea.sflag [#allocation5], 1
    %729 = vsyncpa %s728, 1
    %730 = vsyncpa [#allocation8], 1
    %s731 = scalar_lea.sflag [#allocation8], 1
    %732 = vsyncpa %s731, 1
    %733 = vsyncpa [#allocation6], 1
    %s734 = scalar_lea.sflag [#allocation6], 1
    %735 = vsyncpa %s734, 1

</llo_original>
